<compile_context>
chip_gen: v5e
topology: v5e:2x2
jax: 0.10.0
libtpu: 0.0.40
codegen_flags: <defaults>
</compile_context>

<pallas_src>
import jax
import jax.numpy as jnp
from jax.experimental import pallas as pl
from jax.experimental.pallas import tpu as pltpu

HIDDEN = 256
T_EMB_DIM = 16
LN_EPS = 1e-5


def _round_up(x, m):
    return ((x + m - 1) // m) * m


# ---------------------------------------------------------------------------
# In-kernel math helpers
# ---------------------------------------------------------------------------
def _mish_fast(x):
    # mish(x) = x * tanh(softplus(x)) == x * n / (n + 2),  n = e*(e+2), e = exp(x)
    # Single EUP exp; the divide becomes an EUP approx-reciprocal + one Newton
    # step (error ~2^-24, well inside the 1e-4 check). Clamp keeps f32 finite
    # (exact for x > 20 where mish(x) == x to f32 precision).
    e = jnp.exp(jnp.minimum(x, 20.0))
    n = e * (e + 2.0)
    d = n + 2.0
    inv = pl.reciprocal(d, approx=True)
    inv = inv * (2.0 - d * inv)          # one Newton refinement
    return x * (n * inv)


def _layernorm_noaffine(x):
    # Two-moment LayerNorm (affine g/beta folded into the next layer's weights).
    inv_n = 1.0 / x.shape[-1]
    s1 = jnp.sum(x, axis=-1, keepdims=True)
    s2 = jnp.sum(x * x, axis=-1, keepdims=True)
    mu = s1 * inv_n
    var = jnp.maximum(s2 * inv_n - mu * mu, 0.0)
    return (x - mu) * jax.lax.rsqrt(var + LN_EPS)


# ---------------------------------------------------------------------------
# Kernel
# ---------------------------------------------------------------------------
def dac2_kernel(sa_ref, te_ref, w1sa_ref, w1t_ref, vecs_ref, w2_ref, w3_ref,
                b3_ref, out_ref):
    f32 = jnp.float32

    sa = sa_ref[...]                       # (TB, sa_dim + 1); last column = raw t
    t = sa[:, -1:]                         # (TB, 1)

    # t-encoder layer 1 (K=1): VPU broadcast FMA; 1/t_steps pre-folded into te_w1.
    te_w1 = te_ref[0:1, :]
    te_b1 = te_ref[1:2, :]
    h = _mish_fast(t * te_w1 + te_b1)      # (TB, 16)

    # vecs rows: 0 = b1', 1 = b2' (biases with all wrapper-side folds applied)
    b1 = vecs_ref[0:1, :]
    b2 = vecs_ref[1:2, :]

    # layer 1: t-encoder Linear #2 pre-folded into w1t_ref (= te_w2 @ w1[t-block]);
    # the appended zero row of w1sa_ref nulls the t column of sa.
    x = (jnp.dot(sa, w1sa_ref[...], preferred_element_type=f32)
         + jnp.dot(h, w1t_ref[...], preferred_element_type=f32)
         + b1)
    x = _layernorm_noaffine(_mish_fast(x))

    # layer 2 (LN1 affine pre-folded into w2 / b2)
    x = jnp.dot(x, w2_ref[...], preferred_element_type=f32) + b2
    x = _layernorm_noaffine(_mish_fast(x))

    # output projection (LN2 affine pre-folded; 128-lane padded -> unmasked vst)
    out_ref[...] = jnp.dot(x, w3_ref[...], preferred_element_type=f32) + b3_ref[...]


# ---------------------------------------------------------------------------
# Parameters (torch-like logical params) + packing into kernel inputs
# ---------------------------------------------------------------------------
def xavier_uniform(key, fan_in, fan_out):
    limit = (6.0 / (fan_in + fan_out)) ** 0.5
    return jax.random.uniform(key, (fan_in, fan_out), jnp.float32, -limit, limit)


def init_params(key, state_dim, action_dim):
    in_dim = state_dim + action_dim + T_EMB_DIM
    ks = jax.random.split(key, 5)
    p = {}
    p["te_w1"] = xavier_uniform(ks[0], 1, T_EMB_DIM)
    p["te_b1"] = jnp.zeros((1, T_EMB_DIM), jnp.float32)
    p["te_w2"] = xavier_uniform(ks[1], T_EMB_DIM, T_EMB_DIM)
    p["te_b2"] = jnp.zeros((1, T_EMB_DIM), jnp.float32)
    p["w1"] = xavier_uniform(ks[2], in_dim, HIDDEN)
    p["b1"] = jnp.zeros((1, HIDDEN), jnp.float32)
    p["g1"] = jnp.ones((1, HIDDEN), jnp.float32)
    p["be1"] = jnp.zeros((1, HIDDEN), jnp.float32)
    p["w2"] = xavier_uniform(ks[3], HIDDEN, HIDDEN)
    p["b2"] = jnp.zeros((1, HIDDEN), jnp.float32)
    p["g2"] = jnp.ones((1, HIDDEN), jnp.float32)
    p["be2"] = jnp.zeros((1, HIDDEN), jnp.float32)
    p["w3"] = xavier_uniform(ks[4], HIDDEN, action_dim)
    p["b3"] = jnp.zeros((1, action_dim), jnp.float32)
    return p


def pack_params(p, state_dim, action_dim, t_steps):
    """Pack logical params into kernel inputs, pre-folding everything possible."""
    sa_dim = state_dim + action_dim

    # t-encoder layer 1: fold 1/t_steps into te_w1 (kernel sees raw t).
    te_small = jnp.zeros((8, T_EMB_DIM), jnp.float32)
    te_small = te_small.at[0].set(p["te_w1"][0] / float(t_steps))
    te_small = te_small.at[1].set(p["te_b1"][0])

    w1sa = p["w1"][:sa_dim]                                   # (sa_dim, 256)
    w1t = p["w1"][sa_dim:]                                    # (16, 256)
    # extra zero row so the kernel can matmul the full (state||action||t) block
    w1sa_p = jnp.concatenate([w1sa, jnp.zeros((1, HIDDEN), jnp.float32)], axis=0)
    # fold t-encoder Linear #2 into the layer-1 t-block weight / bias
    w1t_f = p["te_w2"] @ w1t                                  # (16, 256)
    b1_f = p["b1"] + p["te_b2"] @ w1t                         # (1, 256)

    # fold LayerNorm-1 affine into layer 2
    w2_f = p["g1"].T * p["w2"]                                # (256, 256)
    b2_f = p["b2"] + p["be1"] @ p["w2"]                       # (1, 256)

    # output projection: pad to 128 lanes, fold LayerNorm-2 affine in
    out_pad = max(128, _round_up(action_dim, 128))
    w3 = jnp.zeros((HIDDEN, out_pad), jnp.float32).at[:, :action_dim].set(p["w3"])
    b3 = jnp.zeros((1, out_pad), jnp.float32).at[:, :action_dim].set(p["b3"])
    w3_f = p["g2"].T * w3                                     # (256, out_pad)
    b3_f = b3 + p["be2"] @ w3                                 # (1, out_pad)

    vecs = jnp.zeros((8, HIDDEN), jnp.float32)
    vecs = vecs.at[0].set(b1_f[0])
    vecs = vecs.at[1].set(b2_f[0])

    return (te_small, w1sa_p, w1t_f, vecs, w2_f, w3_f, b3_f)


# ---------------------------------------------------------------------------
# Wrapper
# ---------------------------------------------------------------------------
def _pick_tile_b(B, max_tile=2048, min_steps=2):
    """Batch tile: <= max_tile rows, >= min_steps grid steps when the batch
    allows it (so v7x's two TensorCores both get work), padding waste <= 7 rows."""
    Bp8 = _round_up(max(B, 1), 8)
    n_steps = max(pl.cdiv(Bp8, max_tile), min(min_steps, Bp8 // 8), 1)
    return _round_up(pl.cdiv(Bp8, n_steps), 8)


def dac2_forward(state, action, t, packed, max_tile=2048):
    te_small, w1sa_p, w1t_f, vecs, w2_f, w3_f, b3_f = packed
    B = state.shape[0]
    action_dim = action.shape[1]
    out_pad = w3_f.shape[1]

    # state || action || raw t   (t scale is folded into te_w1)
    sa_t = jnp.concatenate(
        [state.astype(jnp.float32), action.astype(jnp.float32),
         t.reshape(B, 1).astype(jnp.float32)], axis=-1)
    sa_cols = sa_t.shape[1]

    TILE_B = _pick_tile_b(B, max_tile=max_tile)
    Bp = _round_up(B, TILE_B)
    if Bp != B:
        sa_t = jnp.pad(sa_t, ((0, Bp - B), (0, 0)))
    grid = (Bp // TILE_B,)

    def batch_spec(cols):
        return pl.BlockSpec((TILE_B, cols), lambda i: (i, 0))

    def resident(w):
        # Constant block index -> Pallas keeps the block VMEM-resident across steps.
        return pl.BlockSpec(w.shape, lambda i: (0, 0))

    out = pl.pallas_call(
        dac2_kernel,
        out_shape=jax.ShapeDtypeStruct((Bp, out_pad), jnp.float32),
        grid=grid,
        in_specs=[batch_spec(sa_cols),
                  resident(te_small), resident(w1sa_p), resident(w1t_f),
                  resident(vecs), resident(w2_f), resident(w3_f), resident(b3_f)],
        out_specs=batch_spec(out_pad),
        compiler_params=pltpu.CompilerParams(
            dimension_semantics=("parallel",),
            # actual working set + headroom; well under v7x's 64 MiB physical VMEM
            vmem_limit_bytes=32 * 1024 * 1024),
    )(sa_t, te_small, w1sa_p, w1t_f, vecs, w2_f, w3_f, b3_f)

    return out[:B, :action_dim]


# ---------------------------------------------------------------------------
# Pure-JAX reference (mirrors the PyTorch module exactly)
# ---------------------------------------------------------------------------
def _mish_ref(x):
    sp = jnp.maximum(x, 0.0) + jnp.log1p(jnp.exp(-jnp.abs(x)))
    return x * jnp.tanh(sp)


def _layernorm_ref(x, g, b):
    mu = jnp.mean(x, axis=-1, keepdims=True)
    var = jnp.mean((x - mu) ** 2, axis=-1, keepdims=True)
    return (x - mu) * jax.lax.rsqrt(var + LN_EPS) * g + b


def dac2_forward_ref(state, action, t, p, t_steps):
    tt = (t.reshape(-1, 1) / float(t_steps)).astype(jnp.float32)
    h = _mish_ref(tt @ p["te_w1"] + p["te_b1"])
    t_emb = h @ p["te_w2"] + p["te_b2"]
    x = jnp.concatenate([state, action, t_emb], axis=-1) @ p["w1"] + p["b1"]
    x = _layernorm_ref(_mish_ref(x), p["g1"], p["be1"])
    x = _layernorm_ref(_mish_ref(x @ p["w2"] + p["b2"]), p["g2"], p["be2"])
    return x @ p["w3"] + p["b3"]


if __name__ == "__main__":
    state_dim, action_dim, t_steps, batch = 4, 2, 5, 8

    key = jax.random.PRNGKey(0)
    k_params, k_state, k_action, k_t = jax.random.split(key, 4)

    params = init_params(k_params, state_dim, action_dim)
    packed = pack_params(params, state_dim, action_dim, t_steps)

    state = jax.random.normal(k_state, (batch, state_dim), jnp.float32)
    action = jax.random.normal(k_action, (batch, action_dim), jnp.float32)
    t = jax.random.randint(k_t, (batch,), 0, t_steps).astype(jnp.float32)

    out = dac2_forward(state, action, t, packed)
    jax.block_until_ready(out)

    ref = dac2_forward_ref(state, action, t, params, t_steps)
    assert out.shape == (batch, action_dim)
    assert jnp.allclose(out, ref, atol=1e-4, rtol=1e-4), "mismatch vs reference"

    print("KERNEL_OK")
</pallas_src>

<mosaic_0001>
module attributes {stable_mosaic.version = 11 : i64} {
  func.func @dac2_kernel(%arg0: i32, %arg1: memref<8x7xf32, #tpu.memory_space<vmem>>, %arg2: memref<8x16xf32, #tpu.memory_space<vmem>>, %arg3: memref<7x256xf32, #tpu.memory_space<vmem>>, %arg4: memref<16x256xf32, #tpu.memory_space<vmem>>, %arg5: memref<8x256xf32, #tpu.memory_space<vmem>>, %arg6: memref<256x256xf32, #tpu.memory_space<vmem>>, %arg7: memref<256x128xf32, #tpu.memory_space<vmem>>, %arg8: memref<1x128xf32, #tpu.memory_space<vmem>>, %arg9: memref<8x128xf32, #tpu.memory_space<vmem>>) attributes {dimension_semantics = [#tpu.dimension_semantics<parallel>], iteration_bounds = array<i64: 1>, scalar_prefetch = 0 : i64, scratch_operands = 0 : i64, tpu.core_type = #tpu.core_type<tc>, window_params = [{transform_indices = @transform_0, window_bounds = array<i64: 8, 7>}, {pipeline_mode = #tpu.pipeline_mode<synchronous>, transform_indices = @transform_1, window_bounds = array<i64: 8, 16>}, {pipeline_mode = #tpu.pipeline_mode<synchronous>, transform_indices = @transform_2, window_bounds = array<i64: 7, 256>}, {pipeline_mode = #tpu.pipeline_mode<synchronous>, transform_indices = @transform_3, window_bounds = array<i64: 16, 256>}, {pipeline_mode = #tpu.pipeline_mode<synchronous>, transform_indices = @transform_4, window_bounds = array<i64: 8, 256>}, {pipeline_mode = #tpu.pipeline_mode<synchronous>, transform_indices = @transform_5, window_bounds = array<i64: 256, 256>}, {pipeline_mode = #tpu.pipeline_mode<synchronous>, transform_indices = @transform_6, window_bounds = array<i64: 256, 128>}, {pipeline_mode = #tpu.pipeline_mode<synchronous>, transform_indices = @transform_7, window_bounds = array<i64: 1, 128>}, {transform_indices = @transform_8, window_bounds = array<i64: 8, 128>}]} {
    %c0 = arith.constant 0 : index
    %c0_0 = arith.constant 0 : index
    %0 = vector.load %arg1[%c0, %c0_0] : memref<8x7xf32, #tpu.memory_space<vmem>>, vector<8x7xf32>
    %1 = vector.extract_strided_slice %0 {offsets = [0, 6], sizes = [8, 1], strides = [1, 1]} : vector<8x7xf32> to vector<8x1xf32>
    %c0_1 = arith.constant 0 : index
    %c0_2 = arith.constant 0 : index
    %2 = vector.load %arg2[%c0_1, %c0_2] : memref<8x16xf32, #tpu.memory_space<vmem>>, vector<1x16xf32>
    %c1 = arith.constant 1 : index
    %c0_3 = arith.constant 0 : index
    %3 = vector.load %arg2[%c1, %c0_3] : memref<8x16xf32, #tpu.memory_space<vmem>>, vector<1x16xf32>
    %4 = vector.broadcast %1 : vector<8x1xf32> to vector<8x16xf32>
    %5 = vector.broadcast %2 : vector<1x16xf32> to vector<8x16xf32>
    %6 = arith.mulf %4, %5 : vector<8x16xf32>
    %7 = vector.broadcast %3 : vector<1x16xf32> to vector<8x16xf32>
    %8 = arith.addf %6, %7 : vector<8x16xf32>
    %cst = arith.constant 2.000000e+01 : f32
    %9 = vector.broadcast %cst : f32 to vector<8x16xf32>
    %10 = arith.minimumf %8, %9 : vector<8x16xf32>
    %11 = math.exp %10 : vector<8x16xf32>
    %cst_4 = arith.constant 2.000000e+00 : f32
    %12 = vector.broadcast %cst_4 : f32 to vector<8x16xf32>
    %13 = arith.addf %11, %12 : vector<8x16xf32>
    %14 = arith.mulf %11, %13 : vector<8x16xf32>
    %cst_5 = arith.constant 2.000000e+00 : f32
    %15 = vector.broadcast %cst_5 : f32 to vector<8x16xf32>
    %16 = arith.addf %14, %15 : vector<8x16xf32>
    %17 = tpu.reciprocal %16 {approx = true} : vector<8x16xf32> -> vector<8x16xf32>
    %18 = arith.mulf %16, %17 : vector<8x16xf32>
    %cst_6 = arith.constant 2.000000e+00 : f32
    %19 = vector.broadcast %cst_6 : f32 to vector<8x16xf32>
    %20 = arith.subf %19, %18 : vector<8x16xf32>
    %21 = arith.mulf %17, %20 : vector<8x16xf32>
    %22 = arith.mulf %14, %21 : vector<8x16xf32>
    %23 = arith.mulf %8, %22 : vector<8x16xf32>
    %c0_7 = arith.constant 0 : index
    %c0_8 = arith.constant 0 : index
    %24 = vector.load %arg5[%c0_7, %c0_8] : memref<8x256xf32, #tpu.memory_space<vmem>>, vector<1x256xf32>
    %c1_9 = arith.constant 1 : index
    %c0_10 = arith.constant 0 : index
    %25 = vector.load %arg5[%c1_9, %c0_10] : memref<8x256xf32, #tpu.memory_space<vmem>>, vector<1x256xf32>
    %c0_11 = arith.constant 0 : index
    %c0_12 = arith.constant 0 : index
    %26 = vector.load %arg3[%c0_11, %c0_12] : memref<7x256xf32, #tpu.memory_space<vmem>>, vector<7x256xf32>
    %cst_13 = arith.constant dense<0.000000e+00> : vector<8x256xf32>
    %27 = tpu.matmul %0, %26, %cst_13 {dimension_numbers = #tpu.dot_dimension_numbers<[1], [0], [0], [1], [0, 0, 1, 1], [], []>} : vector<8x7xf32>, vector<7x256xf32>, vector<8x256xf32> -> vector<8x256xf32>
    %c0_14 = arith.constant 0 : index
    %c0_15 = arith.constant 0 : index
    %28 = vector.load %arg4[%c0_14, %c0_15] : memref<16x256xf32, #tpu.memory_space<vmem>>, vector<16x256xf32>
    %cst_16 = arith.constant dense<0.000000e+00> : vector<8x256xf32>
    %29 = tpu.matmul %23, %28, %cst_16 {dimension_numbers = #tpu.dot_dimension_numbers<[1], [0], [0], [1], [0, 0, 1, 1], [], []>} : vector<8x16xf32>, vector<16x256xf32>, vector<8x256xf32> -> vector<8x256xf32>
    %30 = arith.addf %27, %29 : vector<8x256xf32>
    %31 = vector.broadcast %24 : vector<1x256xf32> to vector<8x256xf32>
    %32 = arith.addf %30, %31 : vector<8x256xf32>
    %cst_17 = arith.constant 2.000000e+01 : f32
    %33 = vector.broadcast %cst_17 : f32 to vector<8x256xf32>
    %34 = arith.minimumf %32, %33 : vector<8x256xf32>
    %35 = math.exp %34 : vector<8x256xf32>
    %cst_18 = arith.constant 2.000000e+00 : f32
    %36 = vector.broadcast %cst_18 : f32 to vector<8x256xf32>
    %37 = arith.addf %35, %36 : vector<8x256xf32>
    %38 = arith.mulf %35, %37 : vector<8x256xf32>
    %cst_19 = arith.constant 2.000000e+00 : f32
    %39 = vector.broadcast %cst_19 : f32 to vector<8x256xf32>
    %40 = arith.addf %38, %39 : vector<8x256xf32>
    %41 = tpu.reciprocal %40 {approx = true} : vector<8x256xf32> -> vector<8x256xf32>
    %42 = arith.mulf %40, %41 : vector<8x256xf32>
    %cst_20 = arith.constant 2.000000e+00 : f32
    %43 = vector.broadcast %cst_20 : f32 to vector<8x256xf32>
    %44 = arith.subf %43, %42 : vector<8x256xf32>
    %45 = arith.mulf %41, %44 : vector<8x256xf32>
    %46 = arith.mulf %38, %45 : vector<8x256xf32>
    %47 = arith.mulf %32, %46 : vector<8x256xf32>
    %cst_21 = arith.constant dense<0.000000e+00> : vector<8xf32>
    %48 = vector.multi_reduction <add>, %47, %cst_21 [1] : vector<8x256xf32> to vector<8xf32>
    %49 = vector.shape_cast %48 : vector<8xf32> to vector<8x1xf32>
    %50 = arith.mulf %47, %47 : vector<8x256xf32>
    %cst_22 = arith.constant dense<0.000000e+00> : vector<8xf32>
    %51 = vector.multi_reduction <add>, %50, %cst_22 [1] : vector<8x256xf32> to vector<8xf32>
    %52 = vector.shape_cast %51 : vector<8xf32> to vector<8x1xf32>
    %cst_23 = arith.constant 3.906250e-03 : f32
    %53 = vector.broadcast %cst_23 : f32 to vector<8x1xf32>
    %54 = arith.mulf %49, %53 : vector<8x1xf32>
    %cst_24 = arith.constant 3.906250e-03 : f32
    %55 = vector.broadcast %cst_24 : f32 to vector<8x1xf32>
    %56 = arith.mulf %52, %55 : vector<8x1xf32>
    %57 = arith.mulf %54, %54 : vector<8x1xf32>
    %58 = arith.subf %56, %57 : vector<8x1xf32>
    %cst_25 = arith.constant 0.000000e+00 : f32
    %59 = vector.broadcast %cst_25 : f32 to vector<8x1xf32>
    %60 = arith.maximumf %58, %59 : vector<8x1xf32>
    %61 = vector.broadcast %54 : vector<8x1xf32> to vector<8x256xf32>
    %62 = arith.subf %47, %61 : vector<8x256xf32>
    %cst_26 = arith.constant 9.99999974E-6 : f32
    %63 = vector.broadcast %cst_26 : f32 to vector<8x1xf32>
    %64 = arith.addf %60, %63 : vector<8x1xf32>
    %65 = math.rsqrt %64 : vector<8x1xf32>
    %66 = vector.broadcast %65 : vector<8x1xf32> to vector<8x256xf32>
    %67 = arith.mulf %62, %66 : vector<8x256xf32>
    %c0_27 = arith.constant 0 : index
    %c0_28 = arith.constant 0 : index
    %68 = vector.load %arg6[%c0_27, %c0_28] : memref<256x256xf32, #tpu.memory_space<vmem>>, vector<256x256xf32>
    %cst_29 = arith.constant dense<0.000000e+00> : vector<8x256xf32>
    %69 = tpu.matmul %67, %68, %cst_29 {dimension_numbers = #tpu.dot_dimension_numbers<[1], [0], [0], [1], [0, 0, 1, 1], [], []>} : vector<8x256xf32>, vector<256x256xf32>, vector<8x256xf32> -> vector<8x256xf32>
    %70 = vector.broadcast %25 : vector<1x256xf32> to vector<8x256xf32>
    %71 = arith.addf %69, %70 : vector<8x256xf32>
    %cst_30 = arith.constant 2.000000e+01 : f32
    %72 = vector.broadcast %cst_30 : f32 to vector<8x256xf32>
    %73 = arith.minimumf %71, %72 : vector<8x256xf32>
    %74 = math.exp %73 : vector<8x256xf32>
    %cst_31 = arith.constant 2.000000e+00 : f32
    %75 = vector.broadcast %cst_31 : f32 to vector<8x256xf32>
    %76 = arith.addf %74, %75 : vector<8x256xf32>
    %77 = arith.mulf %74, %76 : vector<8x256xf32>
    %cst_32 = arith.constant 2.000000e+00 : f32
    %78 = vector.broadcast %cst_32 : f32 to vector<8x256xf32>
    %79 = arith.addf %77, %78 : vector<8x256xf32>
    %80 = tpu.reciprocal %79 {approx = true} : vector<8x256xf32> -> vector<8x256xf32>
    %81 = arith.mulf %79, %80 : vector<8x256xf32>
    %cst_33 = arith.constant 2.000000e+00 : f32
    %82 = vector.broadcast %cst_33 : f32 to vector<8x256xf32>
    %83 = arith.subf %82, %81 : vector<8x256xf32>
    %84 = arith.mulf %80, %83 : vector<8x256xf32>
    %85 = arith.mulf %77, %84 : vector<8x256xf32>
    %86 = arith.mulf %71, %85 : vector<8x256xf32>
    %cst_34 = arith.constant dense<0.000000e+00> : vector<8xf32>
    %87 = vector.multi_reduction <add>, %86, %cst_34 [1] : vector<8x256xf32> to vector<8xf32>
    %88 = vector.shape_cast %87 : vector<8xf32> to vector<8x1xf32>
    %89 = arith.mulf %86, %86 : vector<8x256xf32>
    %cst_35 = arith.constant dense<0.000000e+00> : vector<8xf32>
    %90 = vector.multi_reduction <add>, %89, %cst_35 [1] : vector<8x256xf32> to vector<8xf32>
    %91 = vector.shape_cast %90 : vector<8xf32> to vector<8x1xf32>
    %cst_36 = arith.constant 3.906250e-03 : f32
    %92 = vector.broadcast %cst_36 : f32 to vector<8x1xf32>
    %93 = arith.mulf %88, %92 : vector<8x1xf32>
    %cst_37 = arith.constant 3.906250e-03 : f32
    %94 = vector.broadcast %cst_37 : f32 to vector<8x1xf32>
    %95 = arith.mulf %91, %94 : vector<8x1xf32>
    %96 = arith.mulf %93, %93 : vector<8x1xf32>
    %97 = arith.subf %95, %96 : vector<8x1xf32>
    %cst_38 = arith.constant 0.000000e+00 : f32
    %98 = vector.broadcast %cst_38 : f32 to vector<8x1xf32>
    %99 = arith.maximumf %97, %98 : vector<8x1xf32>
    %100 = vector.broadcast %93 : vector<8x1xf32> to vector<8x256xf32>
    %101 = arith.subf %86, %100 : vector<8x256xf32>
    %cst_39 = arith.constant 9.99999974E-6 : f32
    %102 = vector.broadcast %cst_39 : f32 to vector<8x1xf32>
    %103 = arith.addf %99, %102 : vector<8x1xf32>
    %104 = math.rsqrt %103 : vector<8x1xf32>
    %105 = vector.broadcast %104 : vector<8x1xf32> to vector<8x256xf32>
    %106 = arith.mulf %101, %105 : vector<8x256xf32>
    %c0_40 = arith.constant 0 : index
    %c0_41 = arith.constant 0 : index
    %107 = vector.load %arg7[%c0_40, %c0_41] : memref<256x128xf32, #tpu.memory_space<vmem>>, vector<256x128xf32>
    %cst_42 = arith.constant dense<0.000000e+00> : vector<8x128xf32>
    %108 = tpu.matmul %106, %107, %cst_42 {dimension_numbers = #tpu.dot_dimension_numbers<[1], [0], [0], [1], [0, 0, 1, 1], [], []>} : vector<8x256xf32>, vector<256x128xf32>, vector<8x128xf32> -> vector<8x128xf32>
    %c0_43 = arith.constant 0 : index
    %c0_44 = arith.constant 0 : index
    %109 = vector.load %arg8[%c0_43, %c0_44] : memref<1x128xf32, #tpu.memory_space<vmem>>, vector<1x128xf32>
    %110 = vector.broadcast %109 : vector<1x128xf32> to vector<8x128xf32>
    %111 = arith.addf %108, %110 : vector<8x128xf32>
    %c0_45 = arith.constant 0 : index
    %c0_46 = arith.constant 0 : index
    %112 = vector.load %arg9[%c0_45, %c0_46] : memref<8x128xf32, #tpu.memory_space<vmem>>, vector<8x128xf32>
    tpu.vector_store %arg9[%c0_45, %c0_46], %111 {strides = array<i32>} : memref<8x128xf32, #tpu.memory_space<vmem>>, vector<8x128xf32>,
    return
  }
  func.func @transform_0(%arg0: i32) -> (i32, i32) {
    %c0_i32 = arith.constant 0 : i32
    %c0_i32_0 = arith.constant 0 : i32
    return %arg0, %c0_i32 : i32, i32
  }
  func.func @transform_1(%arg0: i32) -> (i32, i32) {
    %c0_i32 = arith.constant 0 : i32
    %c0_i32_0 = arith.constant 0 : i32
    %c0_i32_1 = arith.constant 0 : i32
    return %c0_i32, %c0_i32_0 : i32, i32
  }
  func.func @transform_2(%arg0: i32) -> (i32, i32) {
    %c0_i32 = arith.constant 0 : i32
    %c0_i32_0 = arith.constant 0 : i32
    %c0_i32_1 = arith.constant 0 : i32
    return %c0_i32, %c0_i32_0 : i32, i32
  }
  func.func @transform_3(%arg0: i32) -> (i32, i32) {
    %c0_i32 = arith.constant 0 : i32
    %c0_i32_0 = arith.constant 0 : i32
    %c0_i32_1 = arith.constant 0 : i32
    return %c0_i32, %c0_i32_0 : i32, i32
  }
  func.func @transform_4(%arg0: i32) -> (i32, i32) {
    %c0_i32 = arith.constant 0 : i32
    %c0_i32_0 = arith.constant 0 : i32
    %c0_i32_1 = arith.constant 0 : i32
    return %c0_i32, %c0_i32_0 : i32, i32
  }
  func.func @transform_5(%arg0: i32) -> (i32, i32) {
    %c0_i32 = arith.constant 0 : i32
    %c0_i32_0 = arith.constant 0 : i32
    %c0_i32_1 = arith.constant 0 : i32
    return %c0_i32, %c0_i32_0 : i32, i32
  }
  func.func @transform_6(%arg0: i32) -> (i32, i32) {
    %c0_i32 = arith.constant 0 : i32
    %c0_i32_0 = arith.constant 0 : i32
    %c0_i32_1 = arith.constant 0 : i32
    return %c0_i32, %c0_i32_0 : i32, i32
  }
  func.func @transform_7(%arg0: i32) -> (i32, i32) {
    %c0_i32 = arith.constant 0 : i32
    %c0_i32_0 = arith.constant 0 : i32
    %c0_i32_1 = arith.constant 0 : i32
    return %c0_i32, %c0_i32_0 : i32, i32
  }
  func.func @transform_8(%arg0: i32) -> (i32, i32) {
    %c0_i32 = arith.constant 0 : i32
    %c0_i32_0 = arith.constant 0 : i32
    return %arg0, %c0_i32 : i32, i32
  }
}

</mosaic_0001>

<llo_original>
// kernel: tpu_custom_call.1
$region0: #{tpu_custom_call.1}
  #allocation0 [shape = 'u32[]', space=smem, size = 0x4, offset = 0x4, fixed_abs, tag = 'smem constant byte address 0x4 - core index']
  #allocation1 [shape = 'u32[72,128]{1,0:T(1,128)}', space=vmem, size = 0x9000, scoped, tag = 'internal scratch']
  %s0 = inlined_call_operand.hbm [shape: f32[8,7], index: 0, kind: input, shape index: {}]
  %s1 = inlined_call_operand.hbm [shape: f32[8,16], index: 1, kind: input, shape index: {}]
  %s2 = inlined_call_operand.hbm [shape: f32[7,256], index: 2, kind: input, shape index: {}]
  %s3 = inlined_call_operand.hbm [shape: f32[16,256], index: 3, kind: input, shape index: {}]
  %s4 = inlined_call_operand.hbm [shape: f32[8,256], index: 4, kind: input, shape index: {}]
  %s5 = inlined_call_operand.hbm [shape: f32[256,256], index: 5, kind: input, shape index: {}]
  %s6 = inlined_call_operand.hbm [shape: f32[256,128], index: 6, kind: input, shape index: {}]
  %s7 = inlined_call_operand.vmem [shape: f32[1,128], index: 7, kind: input, shape index: {}]
  %s8 = inlined_call_operand.hbm [shape: f32[8,128], index: 8, kind: output, shape index: {}]
  %s9 = sld [smem:[#allocation0]]
  $region70: #{tpu_custom_call.1} parent=0
    _
  %s11 = ssub.s32 1, %s9
  %s12 = scalar_select 0, %s11, %s9
  $region1: #{tpu_custom_call.1} parent=0
    #allocation2 [shape = 'u8[4096]{0}', space=vmem, size = 0x1000, scoped, tag = 'input window, operand 0, single buffered']
    #allocation3 [shape = 's32[1]{0}', space=sflag, size = 0x4, scoped, tag = 'scoped memory for tpu_custom_call.1']
    #allocation4 [shape = 's32[1]{0}', space=sflag, size = 0x4, scoped, tag = 'scoped memory for tpu_custom_call.1']
    #allocation5 [shape = 'u8[4096]{0}', space=vmem, size = 0x1000, scoped, tag = 'input window, operand 1, single buffered']
    #allocation6 [shape = 's32[1]{0}', space=sflag, size = 0x4, scoped, tag = 'scoped memory for tpu_custom_call.1']
    #allocation7 [shape = 'u8[8192]{0}', space=vmem, size = 0x2000, scoped, tag = 'input window, operand 2, single buffered']
    #allocation8 [shape = 'u8[16384]{0}', space=vmem, size = 0x4000, scoped, tag = 'input window, operand 3, single buffered']
    #allocation9 [shape = 's32[1]{0}', space=sflag, size = 0x4, scoped, tag = 'scoped memory for tpu_custom_call.1']
    #allocation10 [shape = 'u8[8192]{0}', space=vmem, size = 0x2000, scoped, tag = 'input window, operand 4, single buffered']
    #allocation11 [shape = 'u8[262144]{0}', space=vmem, size = 0x40000, scoped, tag = 'input window, operand 5, single buffered']
    #allocation12 [shape = 's32[1]{0}', space=sflag, size = 0x4, scoped, tag = 'scoped memory for tpu_custom_call.1']
    #allocation13 [shape = 'u8[131072]{0}', space=vmem, size = 0x20000, scoped, tag = 'input window, operand 6, single buffered']
    #allocation14 [shape = 'u8[4096]{0}', space=vmem, size = 0x1000, scoped, tag = 'output window, operand 0, single buffered']
    %13 = vsyncpa [#allocation3], 0
    %14 = vsyncpa [#allocation6], 0
    %15 = vsyncpa [#allocation9], 0
    %16 = vsyncpa [#allocation12], 0
    %17 = vsyncpa [#allocation4], 0
    // Predicated region
    $region2: #{tpu_custom_call.1} parent=1 // pred_check
      _
    $region3: #{tpu_custom_call.1} parent=1 // pred_check_branch
      %19 = sbr.rel (0) target = $region5
    $region4: #{tpu_custom_call.1} parent=1 // pred_region
      %21 = vsyncadd [#allocation3], 0
      %s23 = sshll.u32 %s0, 4
      %s24 = int_to_ptr.hbm [resolvable:$true] %s23
      %s25 = sshll.u32 [#allocation2], 4
      %s26 = int_to_ptr.vmem [resolvable:$true] %s25
      %28 = dma.hbm_to_vmem [thread:$0]  %s24, 128, %s26, [#allocation3]
    $region5: #{tpu_custom_call.1} parent=1 // pred_fallthru
      _
    // Predicated region
    $region6: #{tpu_custom_call.1} parent=1 // pred_check
      _
    $region7: #{tpu_custom_call.1} parent=1 // pred_check_branch
      %30 = sbr.rel (0) target = $region9
    $region8: #{tpu_custom_call.1} parent=1 // pred_region
      %32 = vsyncadd [#allocation6], 0
      %s34 = sshll.u32 %s1, 4
      %s35 = int_to_ptr.hbm [resolvable:$true] %s34
      %s36 = sshll.u32 [#allocation5], 4
      %s37 = int_to_ptr.vmem [resolvable:$true] %s36
      %39 = dma.hbm_to_vmem [thread:$0]  %s35, 128, %s37, [#allocation6]
    $region9: #{tpu_custom_call.1} parent=1 // pred_fallthru
      _
    // Predicated region
    $region10: #{tpu_custom_call.1} parent=1 // pred_check
      _
    $region11: #{tpu_custom_call.1} parent=1 // pred_check_branch
      %41 = sbr.rel (0) target = $region13
    $region12: #{tpu_custom_call.1} parent=1 // pred_region
      %43 = vsyncadd [#allocation6], 0
      %s45 = sshll.u32 %s2, 4
      %s46 = int_to_ptr.hbm [resolvable:$true] %s45
      %s47 = sshll.u32 [#allocation7], 4
      %s48 = int_to_ptr.vmem [resolvable:$true] %s47
      %50 = dma.hbm_to_vmem [thread:$0]  %s46, 256, %s48, [#allocation6]
    $region13: #{tpu_custom_call.1} parent=1 // pred_fallthru
      _
    // Predicated region
    $region14: #{tpu_custom_call.1} parent=1 // pred_check
      _
    $region15: #{tpu_custom_call.1} parent=1 // pred_check_branch
      %52 = sbr.rel (0) target = $region17
    $region16: #{tpu_custom_call.1} parent=1 // pred_region
      %54 = vsyncadd [#allocation9], 0
      %s55 = sshll.u32 %s3, 4
      %s56 = int_to_ptr.hbm [resolvable:$true] %s55
      %s57 = sshll.u32 [#allocation8], 4
      %s58 = int_to_ptr.vmem [resolvable:$true] %s57
      %63 = dma.hbm_to_vmem [thread:$0]  %s56, 512, %s58, [#allocation9], 256, 256, 16
    $region17: #{tpu_custom_call.1} parent=1 // pred_fallthru
      _
    // Predicated region
    $region18: #{tpu_custom_call.1} parent=1 // pred_check
      _
    $region19: #{tpu_custom_call.1} parent=1 // pred_check_branch
      %65 = sbr.rel (0) target = $region21
    $region20: #{tpu_custom_call.1} parent=1 // pred_region
      %67 = vsyncadd [#allocation9], 0
      %s69 = sshll.u32 %s4, 4
      %s70 = int_to_ptr.hbm [resolvable:$true] %s69
      %s71 = sshll.u32 [#allocation10], 4
      %s72 = int_to_ptr.vmem [resolvable:$true] %s71
      %74 = dma.hbm_to_vmem [thread:$0]  %s70, 256, %s72, [#allocation9]
    $region21: #{tpu_custom_call.1} parent=1 // pred_fallthru
      _
    // Predicated region
    $region22: #{tpu_custom_call.1} parent=1 // pred_check
      _
    $region23: #{tpu_custom_call.1} parent=1 // pred_check_branch
      %76 = sbr.rel (0) target = $region25
    $region24: #{tpu_custom_call.1} parent=1 // pred_region
      %78 = vsyncadd [#allocation12], 0
      %s79 = sshll.u32 %s5, 4
      %s80 = int_to_ptr.hbm [resolvable:$true] %s79
      %s81 = sshll.u32 [#allocation11], 4
      %s82 = int_to_ptr.vmem [resolvable:$true] %s81
      %87 = dma.hbm_to_vmem [thread:$0]  %s80, 8192, %s82, [#allocation12], 256, 256, 16
    $region25: #{tpu_custom_call.1} parent=1 // pred_fallthru
      _
    // Predicated region
    $region26: #{tpu_custom_call.1} parent=1 // pred_check
      _
    $region27: #{tpu_custom_call.1} parent=1 // pred_check_branch
      %89 = sbr.rel (0) target = $region29
    $region28: #{tpu_custom_call.1} parent=1 // pred_region
      %91 = vsyncadd [#allocation12], 0
      %s92 = sshll.u32 %s6, 4
      %s93 = int_to_ptr.hbm [resolvable:$true] %s92
      %s94 = sshll.u32 [#allocation13], 4
      %s95 = int_to_ptr.vmem [resolvable:$true] %s94
      %100 = dma.hbm_to_vmem [thread:$0]  %s93, 4096, %s95, [#allocation12], 128, 128, 8
    $region29: #{tpu_custom_call.1} parent=1 // pred_fallthru
      _
    // Predicated region
    $region30: #{tpu_custom_call.1} parent=1 // pred_check
      _
    $region31: #{tpu_custom_call.1} parent=1 // pred_check_branch
      %102 = sbr.rel (0) target = $region33
    $region32: #{tpu_custom_call.1} parent=1 // pred_region
      _
    $region33: #{tpu_custom_call.1} parent=1 // pred_fallthru
      _
    // Predicated region
    $region34: #{tpu_custom_call.1} parent=1 // pred_check
      _
    $region35: #{tpu_custom_call.1} parent=1 // pred_check_branch
      %104 = sbr.rel (0) target = $region37
    $region36: #{tpu_custom_call.1} parent=1 // pred_region
      %106 = dma.done [#allocation3], 128
    $region37: #{tpu_custom_call.1} parent=1 // pred_fallthru
      _
    // Predicated region
    $region38: #{tpu_custom_call.1} parent=1 // pred_check
      _
    $region39: #{tpu_custom_call.1} parent=1 // pred_check_branch
      %108 = sbr.rel (0) target = $region41
    $region40: #{tpu_custom_call.1} parent=1 // pred_region
      %110 = dma.done [#allocation6], 128
    $region41: #{tpu_custom_call.1} parent=1 // pred_fallthru
      _
    // Predicated region
    $region42: #{tpu_custom_call.1} parent=1 // pred_check
      _
    $region43: #{tpu_custom_call.1} parent=1 // pred_check_branch
      %112 = sbr.rel (0) target = $region45
    $region44: #{tpu_custom_call.1} parent=1 // pred_region
      %114 = dma.done [#allocation6], 256
    $region45: #{tpu_custom_call.1} parent=1 // pred_fallthru
      _
    // Predicated region
    $region46: #{tpu_custom_call.1} parent=1 // pred_check
      _
    $region47: #{tpu_custom_call.1} parent=1 // pred_check_branch
      %116 = sbr.rel (0) target = $region49
    $region48: #{tpu_custom_call.1} parent=1 // pred_region
      %118 = dma.done [#allocation9], 512
    $region49: #{tpu_custom_call.1} parent=1 // pred_fallthru
      _
    // Predicated region
    $region50: #{tpu_custom_call.1} parent=1 // pred_check
      _
    $region51: #{tpu_custom_call.1} parent=1 // pred_check_branch
      %120 = sbr.rel (0) target = $region53
    $region52: #{tpu_custom_call.1} parent=1 // pred_region
      %122 = dma.done [#allocation9], 256
    $region53: #{tpu_custom_call.1} parent=1 // pred_fallthru
      _
    // Predicated region
    $region54: #{tpu_custom_call.1} parent=1 // pred_check
      _
    $region55: #{tpu_custom_call.1} parent=1 // pred_check_branch
      %124 = sbr.rel (0) target = $region57
    $region56: #{tpu_custom_call.1} parent=1 // pred_region
      %126 = dma.done [#allocation12], 8192
    $region57: #{tpu_custom_call.1} parent=1 // pred_fallthru
      _
    // Predicated region
    $region58: #{tpu_custom_call.1} parent=1 // pred_check
      _
    $region59: #{tpu_custom_call.1} parent=1 // pred_check_branch
      %128 = sbr.rel (0) target = $region61
    $region60: #{tpu_custom_call.1} parent=1 // pred_region
      %130 = dma.done [#allocation12], 4096
    $region61: #{tpu_custom_call.1} parent=1 // pred_fallthru
      _
    %v131 = vld [vmem:[#allocation2] sm:$0xff]
    %v132 = vld [vmem:[#allocation5] sm:$0x1]
    %v133 = vld [vmem:[#allocation5 + $0x1] sm:$0x1]
    %135 = vset.pattern.permute.xlu0 6
    %136 = vperm.xlu0 %135, %v131
    %v137 = vpop.permute.xlu0 %136
    %v139 = vperm.slane %v132, 0
    %v140 = vmul.f32 %v137, %v139
    %v141 = vperm.slane %v133, 0
    %v142 = vadd.f32 %v140, %v141
    %v143 = vmin.f32 %v142, 20.0
    %v144 = vmul.f32 %v143, 1.442695
    %v145 = vpow.pop %v144
    %v146 = vadd.f32 %v145, 2.0
    %v147 = vmul.f32 %v145, %v146
    %v148 = vadd.f32 %v147, 2.0
    %v149 = vrcp.pop %v148
    %v150 = vmul.f32 %v148, %v149
    %v151 = vsub.f32 2.0, %v150
    %v152 = vmul.f32 %v149, %v151
    %v153 = vmul.f32 %v147, %v152
    %v154 = vmul.f32 %v142, %v153
    %v155 = vld [vmem:[#allocation10] ss:$8 sm:$0x3]
    %s156 = scalar_lea.vmem [#allocation10], 1
    %v157 = vld [vmem:[%s156] ss:$8 sm:$0x3]
    %v158 = vld [vmem:[#allocation7] sm:$0x7f]
    %v159 = vld [vmem:[#allocation7 + $0x8] sm:$0x7f]
    %v160 = vld [vmem:[#allocation8] sm:$0xff]
    %v161 = vld [vmem:[#allocation8 + $0x8] sm:$0xff]
    %v162 = vld [vmem:[#allocation8 + $0x10] sm:$0xff]
    %v163 = vld [vmem:[#allocation8 + $0x18] sm:$0xff]
    %vm164 = vcmask 130048
    %v166 = vsel %vm164, %v154, 0
    %168 = vmatpush.msra.mxu0 0.0
    %169 = vmatpush.msra.mxu0 0.0
    %170 = vmatpush.msra.mxu0 0.0
    %171 = vmatpush.msra.mxu0 0.0
    %172 = vmatpush.msra.mxu0 0.0
    %173 = vmatpush.msra.mxu0 0.0
    %174 = vmatpush.msra.mxu0 0.0
    %175 = vmatpush.msra.mxu0 0.0
    %176 = vmatpush.msra.mxu0 0.0
    %177 = vmatpush.msra.mxu0 0.0
    %178 = vmatpush.msra.mxu0 0.0
    %179 = vmatpush.msra.mxu0 0.0
    %180 = vmatpush.msra.mxu0 0.0
    %181 = vmatpush.msra.mxu0 0.0
    %182 = vmatpush.msra.mxu0 %v162
    %183 = vmatpush.msra.mxu0 %v160
    %184 = vmatmul.f32.gmra.mxu0 %v166
    %v185 = vpop.f32.mrf.mxu0
    %v186 = vadd.f32 0.0, %v185
    %187 = vdwg.mxu0
    %188 = vmatpush.msra.mxu0 0.0
    %189 = vmatpush.msra.mxu0 0.0
    %190 = vmatpush.msra.mxu0 0.0
    %191 = vmatpush.msra.mxu0 0.0
    %192 = vmatpush.msra.mxu0 0.0
    %193 = vmatpush.msra.mxu0 0.0
    %194 = vmatpush.msra.mxu0 0.0
    %195 = vmatpush.msra.mxu0 0.0
    %196 = vmatpush.msra.mxu0 0.0
    %197 = vmatpush.msra.mxu0 0.0
    %198 = vmatpush.msra.mxu0 0.0
    %199 = vmatpush.msra.mxu0 0.0
    %200 = vmatpush.msra.mxu0 0.0
    %201 = vmatpush.msra.mxu0 0.0
    %202 = vmatpush.msra.mxu0 %v163
    %203 = vmatpush.msra.mxu0 %v161
    %204 = vmatmul.f32.gmra.mxu0 %v166
    %v205 = vpop.f32.mrf.mxu0
    %v206 = vadd.f32 0.0, %v205
    %207 = vdwg.mxu0
    %vm208 = vcmask 56320
    %v209 = vsel %vm208, %v131, 0
    %vm211 = vcmask 1046528
    %v213 = vsel %vm211, %v158, 0
    %v216 = vsel %vm211, %v159, 0
    %218 = vmatpush.msra.mxu0 0.0
    %219 = vmatpush.msra.mxu0 0.0
    %220 = vmatpush.msra.mxu0 0.0
    %221 = vmatpush.msra.mxu0 0.0
    %222 = vmatpush.msra.mxu0 0.0
    %223 = vmatpush.msra.mxu0 0.0
    %224 = vmatpush.msra.mxu0 0.0
    %225 = vmatpush.msra.mxu0 0.0
    %226 = vmatpush.msra.mxu0 0.0
    %227 = vmatpush.msra.mxu0 0.0
    %228 = vmatpush.msra.mxu0 0.0
    %229 = vmatpush.msra.mxu0 0.0
    %230 = vmatpush.msra.mxu0 0.0
    %231 = vmatpush.msra.mxu0 0.0
    %232 = vmatpush.msra.mxu0 0.0
    %233 = vmatpush.msra.mxu0 %v213
    %234 = vmatmul.f32.gmra.mxu0 %v209
    %v235 = vpop.f32.mrf.mxu0
    %v236 = vadd.f32 %v186, %v235
    %237 = vdwg.mxu0
    %238 = vmatpush.msra.mxu0 0.0
    %239 = vmatpush.msra.mxu0 0.0
    %240 = vmatpush.msra.mxu0 0.0
    %241 = vmatpush.msra.mxu0 0.0
    %242 = vmatpush.msra.mxu0 0.0
    %243 = vmatpush.msra.mxu0 0.0
    %244 = vmatpush.msra.mxu0 0.0
    %245 = vmatpush.msra.mxu0 0.0
    %246 = vmatpush.msra.mxu0 0.0
    %247 = vmatpush.msra.mxu0 0.0
    %248 = vmatpush.msra.mxu0 0.0
    %249 = vmatpush.msra.mxu0 0.0
    %250 = vmatpush.msra.mxu0 0.0
    %251 = vmatpush.msra.mxu0 0.0
    %252 = vmatpush.msra.mxu0 0.0
    %253 = vmatpush.msra.mxu0 %v216
    %254 = vmatmul.f32.gmra.mxu0 %v209
    %v255 = vpop.f32.mrf.mxu0
    %v256 = vadd.f32 %v206, %v255
    %257 = vdwg.mxu0
    %v259 = vperm.slane %v155, 0
    %v260 = vperm.slane %v155, 1
    %v263 = vadd.f32 %v236, %v259
    %v264 = vadd.f32 %v256, %v260
    %v265 = vmin.f32 %v263, 20.0
    %v266 = vmin.f32 %v264, 20.0
    %v267 = vmul.f32 %v265, 1.442695
    %v268 = vpow.pop %v267
    %v269 = vmul.f32 %v266, 1.442695
    %v270 = vpow.pop %v269
    %v271 = vadd.f32 %v268, 2.0
    %v272 = vadd.f32 %v270, 2.0
    %v273 = vmul.f32 %v268, %v271
    %v274 = vmul.f32 %v270, %v272
    %v275 = vadd.f32 %v273, 2.0
    %v276 = vadd.f32 %v274, 2.0
    %v277 = vrcp.pop %v275
    %v278 = vrcp.pop %v276
    %v279 = vmul.f32 %v275, %v277
    %v280 = vmul.f32 %v276, %v278
    %v281 = vsub.f32 2.0, %v279
    %v282 = vsub.f32 2.0, %v280
    %v283 = vmul.f32 %v277, %v281
    %v284 = vmul.f32 %v278, %v282
    %v285 = vmul.f32 %v273, %v283
    %v286 = vmul.f32 %v274, %v284
    %v287 = vmul.f32 %v263, %v285
    %v288 = vmul.f32 %v264, %v286
    %v289 = vadd.f32 %v287, %v288
    %290 = vadd.xlane.f32.xlu0 %v289
    %v291 = vpop.xlane.xlu0 %290
    %v292 = vmul.f32 %v287, %v287
    %v293 = vmul.f32 %v288, %v288
    %v294 = vadd.f32 %v292, %v293
    %295 = vadd.xlane.f32.xlu0 %v294
    %v296 = vpop.xlane.xlu0 %295
    %v297 = vmul.f32 %v291, 0.00390625
    %v298 = vmul.f32 %v296, 0.00390625
    %v299 = vmul.f32 %v297, %v297
    %v300 = vsub.f32 %v298, %v299
    %v301 = vmax.f32 %v300, 0.0
    %v302 = vsub.f32 %v287, %v297
    %v303 = vsub.f32 %v288, %v297
    %v304 = vadd.f32 %v301, 1e-05
    %v305 = vrsqrt.pop %v304
    %v306 = vmul.f32 %v305, %v304
    %v307 = vmul.f32 %v306, %v305
    %v308 = vmul.f32 0.5, %v307
    %v309 = vsub.f32 1.5, %v308
    %v310 = vmul.f32 %v305, %v309
    %vm311 = vweird.f32 %v304
    %vm312 = vweird.f32 %v305
    %vm313 = vmor %vm311, %vm312
    %v314 = vsel %vm313, %v305, %v310
    %v315 = vmul.f32 %v302, %v314
    %v316 = vmul.f32 %v303, %v314
    %v317 = vld [vmem:[#allocation11] sm:$0xff]
    %v318 = vld [vmem:[#allocation11 + $0x8] sm:$0xff]
    %v319 = vld [vmem:[#allocation11 + $0x10] sm:$0xff]
    %v320 = vld [vmem:[#allocation11 + $0x18] sm:$0xff]
    %v321 = vld [vmem:[#allocation11 + $0x20] sm:$0xff]
    %v322 = vld [vmem:[#allocation11 + $0x28] sm:$0xff]
    %v323 = vld [vmem:[#allocation11 + $0x30] sm:$0xff]
    %v324 = vld [vmem:[#allocation11 + $0x38] sm:$0xff]
    %v325 = vld [vmem:[#allocation11 + $0x40] sm:$0xff]
    %v326 = vld [vmem:[#allocation11 + $0x48] sm:$0xff]
    %v327 = vld [vmem:[#allocation11 + $0x50] sm:$0xff]
    %v328 = vld [vmem:[#allocation11 + $0x58] sm:$0xff]
    %v329 = vld [vmem:[#allocation11 + $0x60] sm:$0xff]
    %v330 = vld [vmem:[#allocation11 + $0x68] sm:$0xff]
    %v331 = vld [vmem:[#allocation11 + $0x70] sm:$0xff]
    %v332 = vld [vmem:[#allocation11 + $0x78] sm:$0xff]
    %v333 = vld [vmem:[#allocation11 + $0x80] sm:$0xff]
    %v334 = vld [vmem:[#allocation11 + $0x88] sm:$0xff]
    %v335 = vld [vmem:[#allocation11 + $0x90] sm:$0xff]
    %v336 = vld [vmem:[#allocation11 + $0x98] sm:$0xff]
    %v337 = vld [vmem:[#allocation11 + $0xa0] sm:$0xff]
    %v338 = vld [vmem:[#allocation11 + $0xa8] sm:$0xff]
    %v339 = vld [vmem:[#allocation11 + $0xb0] sm:$0xff]
    %v340 = vld [vmem:[#allocation11 + $0xb8] sm:$0xff]
    %v341 = vld [vmem:[#allocation11 + $0xc0] sm:$0xff]
    %v342 = vld [vmem:[#allocation11 + $0xc8] sm:$0xff]
    %v343 = vld [vmem:[#allocation11 + $0xd0] sm:$0xff]
    %v344 = vld [vmem:[#allocation11 + $0xd8] sm:$0xff]
    %v345 = vld [vmem:[#allocation11 + $0xe0] sm:$0xff]
    %v346 = vld [vmem:[#allocation11 + $0xe8] sm:$0xff]
    %v347 = vld [vmem:[#allocation11 + $0xf0] sm:$0xff]
    %v348 = vld [vmem:[#allocation11 + $0xf8] sm:$0xff]
    %v349 = vld [vmem:[#allocation11 + $0x100] sm:$0xff]
    %v350 = vld [vmem:[#allocation11 + $0x108] sm:$0xff]
    %v351 = vld [vmem:[#allocation11 + $0x110] sm:$0xff]
    %v352 = vld [vmem:[#allocation11 + $0x118] sm:$0xff]
    %v353 = vld [vmem:[#allocation11 + $0x120] sm:$0xff]
    %v354 = vld [vmem:[#allocation11 + $0x128] sm:$0xff]
    %v355 = vld [vmem:[#allocation11 + $0x130] sm:$0xff]
    %v356 = vld [vmem:[#allocation11 + $0x138] sm:$0xff]
    %v357 = vld [vmem:[#allocation11 + $0x140] sm:$0xff]
    %v358 = vld [vmem:[#allocation11 + $0x148] sm:$0xff]
    %v359 = vld [vmem:[#allocation11 + $0x150] sm:$0xff]
    %v360 = vld [vmem:[#allocation11 + $0x158] sm:$0xff]
    %v361 = vld [vmem:[#allocation11 + $0x160] sm:$0xff]
    %v362 = vld [vmem:[#allocation11 + $0x168] sm:$0xff]
    %v363 = vld [vmem:[#allocation11 + $0x170] sm:$0xff]
    %v364 = vld [vmem:[#allocation11 + $0x178] sm:$0xff]
    %v365 = vld [vmem:[#allocation11 + $0x180] sm:$0xff]
    %v366 = vld [vmem:[#allocation11 + $0x188] sm:$0xff]
    %v367 = vld [vmem:[#allocation11 + $0x190] sm:$0xff]
    %v368 = vld [vmem:[#allocation11 + $0x198] sm:$0xff]
    %v369 = vld [vmem:[#allocation11 + $0x1a0] sm:$0xff]
    %v370 = vld [vmem:[#allocation11 + $0x1a8] sm:$0xff]
    %v371 = vld [vmem:[#allocation11 + $0x1b0] sm:$0xff]
    %v372 = vld [vmem:[#allocation11 + $0x1b8] sm:$0xff]
    %v373 = vld [vmem:[#allocation11 + $0x1c0] sm:$0xff]
    %v374 = vld [vmem:[#allocation11 + $0x1c8] sm:$0xff]
    %v375 = vld [vmem:[#allocation11 + $0x1d0] sm:$0xff]
    %v376 = vld [vmem:[#allocation11 + $0x1d8] sm:$0xff]
    %v377 = vld [vmem:[#allocation11 + $0x1e0] sm:$0xff]
    %v378 = vld [vmem:[#allocation11 + $0x1e8] sm:$0xff]
    %v379 = vld [vmem:[#allocation11 + $0x1f0] sm:$0xff]
    %v380 = vld [vmem:[#allocation11 + $0x1f8] sm:$0xff]
    %v382 = vperm.slane %v157, 0
    %v383 = vperm.slane %v157, 1
    %386 = vmatpush.msra.mxu0 %v347
    %387 = vmatpush.msra.mxu0 %v345
    %388 = vmatpush.msra.mxu0 %v343
    %389 = vmatpush.msra.mxu0 %v341
    %390 = vmatpush.msra.mxu0 %v339
    %391 = vmatpush.msra.mxu0 %v337
    %392 = vmatpush.msra.mxu0 %v335
    %393 = vmatpush.msra.mxu0 %v333
    %394 = vmatpush.msra.mxu0 %v331
    %395 = vmatpush.msra.mxu0 %v329
    %396 = vmatpush.msra.mxu0 %v327
    %397 = vmatpush.msra.mxu0 %v325
    %398 = vmatpush.msra.mxu0 %v323
    %399 = vmatpush.msra.mxu0 %v321
    %400 = vmatpush.msra.mxu0 %v319
    %401 = vmatpush.msra.mxu0 %v317
    %402 = vmatmul.f32.gmra.mxu0 %v315
    %v403 = vpop.f32.mrf.mxu0
    %v404 = vadd.f32 %v382, %v403
    %405 = vdwg.mxu0
    %406 = vmatpush.msra.mxu0 %v379
    %407 = vmatpush.msra.mxu0 %v377
    %408 = vmatpush.msra.mxu0 %v375
    %409 = vmatpush.msra.mxu0 %v373
    %410 = vmatpush.msra.mxu0 %v371
    %411 = vmatpush.msra.mxu0 %v369
    %412 = vmatpush.msra.mxu0 %v367
    %413 = vmatpush.msra.mxu0 %v365
    %414 = vmatpush.msra.mxu0 %v363
    %415 = vmatpush.msra.mxu0 %v361
    %416 = vmatpush.msra.mxu0 %v359
    %417 = vmatpush.msra.mxu0 %v357
    %418 = vmatpush.msra.mxu0 %v355
    %419 = vmatpush.msra.mxu0 %v353
    %420 = vmatpush.msra.mxu0 %v351
    %421 = vmatpush.msra.mxu0 %v349
    %422 = vmatmul.f32.gmra.mxu0 %v316
    %v423 = vpop.f32.mrf.mxu0
    %v424 = vadd.f32 %v404, %v423
    %425 = vdwg.mxu0
    %426 = vmatpush.msra.mxu0 %v348
    %427 = vmatpush.msra.mxu0 %v346
    %428 = vmatpush.msra.mxu0 %v344
    %429 = vmatpush.msra.mxu0 %v342
    %430 = vmatpush.msra.mxu0 %v340
    %431 = vmatpush.msra.mxu0 %v338
    %432 = vmatpush.msra.mxu0 %v336
    %433 = vmatpush.msra.mxu0 %v334
    %434 = vmatpush.msra.mxu0 %v332
    %435 = vmatpush.msra.mxu0 %v330
    %436 = vmatpush.msra.mxu0 %v328
    %437 = vmatpush.msra.mxu0 %v326
    %438 = vmatpush.msra.mxu0 %v324
    %439 = vmatpush.msra.mxu0 %v322
    %440 = vmatpush.msra.mxu0 %v320
    %441 = vmatpush.msra.mxu0 %v318
    %442 = vmatmul.f32.gmra.mxu0 %v315
    %v443 = vpop.f32.mrf.mxu0
    %v444 = vadd.f32 %v383, %v443
    %445 = vdwg.mxu0
    %446 = vmatpush.msra.mxu0 %v380
    %447 = vmatpush.msra.mxu0 %v378
    %448 = vmatpush.msra.mxu0 %v376
    %449 = vmatpush.msra.mxu0 %v374
    %450 = vmatpush.msra.mxu0 %v372
    %451 = vmatpush.msra.mxu0 %v370
    %452 = vmatpush.msra.mxu0 %v368
    %453 = vmatpush.msra.mxu0 %v366
    %454 = vmatpush.msra.mxu0 %v364
    %455 = vmatpush.msra.mxu0 %v362
    %456 = vmatpush.msra.mxu0 %v360
    %457 = vmatpush.msra.mxu0 %v358
    %458 = vmatpush.msra.mxu0 %v356
    %459 = vmatpush.msra.mxu0 %v354
    %460 = vmatpush.msra.mxu0 %v352
    %461 = vmatpush.msra.mxu0 %v350
    %462 = vmatmul.f32.gmra.mxu0 %v316
    %v463 = vpop.f32.mrf.mxu0
    %v464 = vadd.f32 %v444, %v463
    %465 = vdwg.mxu0
    %v466 = vmin.f32 %v424, 20.0
    %v467 = vmin.f32 %v464, 20.0
    %v468 = vmul.f32 %v466, 1.442695
    %v469 = vpow.pop %v468
    %v470 = vmul.f32 %v467, 1.442695
    %v471 = vpow.pop %v470
    %v472 = vadd.f32 %v469, 2.0
    %v473 = vadd.f32 %v471, 2.0
    %v474 = vmul.f32 %v469, %v472
    %v475 = vmul.f32 %v471, %v473
    %v476 = vadd.f32 %v474, 2.0
    %v477 = vadd.f32 %v475, 2.0
    %v478 = vrcp.pop %v476
    %v479 = vrcp.pop %v477
    %v480 = vmul.f32 %v476, %v478
    %v481 = vmul.f32 %v477, %v479
    %v482 = vsub.f32 2.0, %v480
    %v483 = vsub.f32 2.0, %v481
    %v484 = vmul.f32 %v478, %v482
    %v485 = vmul.f32 %v479, %v483
    %v486 = vmul.f32 %v474, %v484
    %v487 = vmul.f32 %v475, %v485
    %v488 = vmul.f32 %v424, %v486
    %v489 = vmul.f32 %v464, %v487
    %v490 = vadd.f32 %v488, %v489
    %491 = vadd.xlane.f32.xlu0 %v490
    %v492 = vpop.xlane.xlu0 %491
    %v493 = vmul.f32 %v488, %v488
    %v494 = vmul.f32 %v489, %v489
    %v495 = vadd.f32 %v493, %v494
    %496 = vadd.xlane.f32.xlu0 %v495
    %v497 = vpop.xlane.xlu0 %496
    %v498 = vmul.f32 %v492, 0.00390625
    %v499 = vmul.f32 %v497, 0.00390625
    %v500 = vmul.f32 %v498, %v498
    %v501 = vsub.f32 %v499, %v500
    %v502 = vmax.f32 %v501, 0.0
    %v503 = vsub.f32 %v488, %v498
    %v504 = vsub.f32 %v489, %v498
    %v505 = vadd.f32 %v502, 1e-05
    %v506 = vrsqrt.pop %v505
    %v507 = vmul.f32 %v506, %v505
    %v508 = vmul.f32 %v507, %v506
    %v509 = vmul.f32 0.5, %v508
    %v510 = vsub.f32 1.5, %v509
    %v511 = vmul.f32 %v506, %v510
    %vm512 = vweird.f32 %v505
    %vm513 = vweird.f32 %v506
    %vm514 = vmor %vm512, %vm513
    %v515 = vsel %vm514, %v506, %v511
    %v516 = vmul.f32 %v503, %v515
    %v517 = vmul.f32 %v504, %v515
    %v518 = vld [vmem:[#allocation13] sm:$0xff]
    %v519 = vld [vmem:[#allocation13 + $0x8] sm:$0xff]
    %v520 = vld [vmem:[#allocation13 + $0x10] sm:$0xff]
    %v521 = vld [vmem:[#allocation13 + $0x18] sm:$0xff]
    %v522 = vld [vmem:[#allocation13 + $0x20] sm:$0xff]
    %v523 = vld [vmem:[#allocation13 + $0x28] sm:$0xff]
    %v524 = vld [vmem:[#allocation13 + $0x30] sm:$0xff]
    %v525 = vld [vmem:[#allocation13 + $0x38] sm:$0xff]
    %v526 = vld [vmem:[#allocation13 + $0x40] sm:$0xff]
    %v527 = vld [vmem:[#allocation13 + $0x48] sm:$0xff]
    %v528 = vld [vmem:[#allocation13 + $0x50] sm:$0xff]
    %v529 = vld [vmem:[#allocation13 + $0x58] sm:$0xff]
    %v530 = vld [vmem:[#allocation13 + $0x60] sm:$0xff]
    %v531 = vld [vmem:[#allocation13 + $0x68] sm:$0xff]
    %v532 = vld [vmem:[#allocation13 + $0x70] sm:$0xff]
    %v533 = vld [vmem:[#allocation13 + $0x78] sm:$0xff]
    %v534 = vld [vmem:[#allocation13 + $0x80] sm:$0xff]
    %v535 = vld [vmem:[#allocation13 + $0x88] sm:$0xff]
    %v536 = vld [vmem:[#allocation13 + $0x90] sm:$0xff]
    %v537 = vld [vmem:[#allocation13 + $0x98] sm:$0xff]
    %v538 = vld [vmem:[#allocation13 + $0xa0] sm:$0xff]
    %v539 = vld [vmem:[#allocation13 + $0xa8] sm:$0xff]
    %v540 = vld [vmem:[#allocation13 + $0xb0] sm:$0xff]
    %v541 = vld [vmem:[#allocation13 + $0xb8] sm:$0xff]
    %v542 = vld [vmem:[#allocation13 + $0xc0] sm:$0xff]
    %v543 = vld [vmem:[#allocation13 + $0xc8] sm:$0xff]
    %v544 = vld [vmem:[#allocation13 + $0xd0] sm:$0xff]
    %v545 = vld [vmem:[#allocation13 + $0xd8] sm:$0xff]
    %v546 = vld [vmem:[#allocation13 + $0xe0] sm:$0xff]
    %v547 = vld [vmem:[#allocation13 + $0xe8] sm:$0xff]
    %v548 = vld [vmem:[#allocation13 + $0xf0] sm:$0xff]
    %v549 = vld [vmem:[#allocation13 + $0xf8] sm:$0xff]
    %v550 = vld [vmem:[%s7] sm:$0x1]
    %v552 = vperm.slane %v550, 0
    %554 = vmatpush.msra.mxu0 %v533
    %555 = vmatpush.msra.mxu0 %v532
    %556 = vmatpush.msra.mxu0 %v531
    %557 = vmatpush.msra.mxu0 %v530
    %558 = vmatpush.msra.mxu0 %v529
    %559 = vmatpush.msra.mxu0 %v528
    %560 = vmatpush.msra.mxu0 %v527
    %561 = vmatpush.msra.mxu0 %v526
    %562 = vmatpush.msra.mxu0 %v525
    %563 = vmatpush.msra.mxu0 %v524
    %564 = vmatpush.msra.mxu0 %v523
    %565 = vmatpush.msra.mxu0 %v522
    %566 = vmatpush.msra.mxu0 %v521
    %567 = vmatpush.msra.mxu0 %v520
    %568 = vmatpush.msra.mxu0 %v519
    %569 = vmatpush.msra.mxu0 %v518
    %570 = vmatmul.f32.gmra.mxu0 %v516
    %v571 = vpop.f32.mrf.mxu0
    %v572 = vadd.f32 %v552, %v571
    %573 = vdwg.mxu0
    %574 = vmatpush.msra.mxu0 %v549
    %575 = vmatpush.msra.mxu0 %v548
    %576 = vmatpush.msra.mxu0 %v547
    %577 = vmatpush.msra.mxu0 %v546
    %578 = vmatpush.msra.mxu0 %v545
    %579 = vmatpush.msra.mxu0 %v544
    %580 = vmatpush.msra.mxu0 %v543
    %581 = vmatpush.msra.mxu0 %v542
    %582 = vmatpush.msra.mxu0 %v541
    %583 = vmatpush.msra.mxu0 %v540
    %584 = vmatpush.msra.mxu0 %v539
    %585 = vmatpush.msra.mxu0 %v538
    %586 = vmatpush.msra.mxu0 %v537
    %587 = vmatpush.msra.mxu0 %v536
    %588 = vmatpush.msra.mxu0 %v535
    %589 = vmatpush.msra.mxu0 %v534
    %590 = vmatmul.f32.gmra.mxu0 %v517
    %v591 = vpop.f32.mrf.mxu0
    %v592 = vadd.f32 %v572, %v591
    %593 = vdwg.mxu0
    %594 = vst [vmem:[#allocation14] sm:$0xff] %v592
    // Predicated region
    $region62: #{tpu_custom_call.1} parent=1 // pred_check
      _
    $region63: #{tpu_custom_call.1} parent=1 // pred_check_branch
      %596 = sbr.rel (0) target = $region65
    $region64: #{tpu_custom_call.1} parent=1 // pred_region
      %598 = vsyncadd [#allocation4], 0
      %s600 = sshll.u32 [#allocation14], 4
      %s601 = int_to_ptr.vmem [resolvable:$true] %s600
      %s602 = sshll.u32 %s8, 4
      %s603 = int_to_ptr.hbm [resolvable:$true] %s602
      %605 = dma.vmem_to_hbm [thread:$0]  %s601, 128, %s603, [#allocation4]
    $region65: #{tpu_custom_call.1} parent=1 // pred_fallthru
      _
    // Predicated region
    $region66: #{tpu_custom_call.1} parent=1 // pred_check
      _
    $region67: #{tpu_custom_call.1} parent=1 // pred_check_branch
      %607 = sbr.rel (0) target = $region69
    $region68: #{tpu_custom_call.1} parent=1 // pred_region
      %609 = dma.done [#allocation4], 128
    $region69: #{tpu_custom_call.1} parent=1 // pred_fallthru
      _
    %610 = vsyncpa [#allocation3], 1
    %611 = vsyncpa [#allocation6], 1
    %612 = vsyncpa [#allocation9], 1
    %613 = vsyncpa [#allocation12], 1
    %614 = vsyncpa [#allocation4], 1

</llo_original>
